<compile_context>
chip_gen: v5e
topology: v5e:2x2
jax: 0.10.0
libtpu: 0.0.40
codegen_flags: <defaults>
</compile_context>

<pallas_src>
import functools

import jax
import jax.numpy as jnp
from jax.experimental import pallas as pl
from jax.experimental.pallas import tpu as pltpu


def _pool_diff_kernel(org_ref, enh_ref, ahk_ref, awt_ref, out_ref):
    """Pooled channel-mean difference for one (batch, row-band) grid point.

    org_ref/enh_ref: (1, C, TH, W)     input row tile (native dtype).
    ahk_ref:         (TH//4, TH)       row-pool matrix, entries 1/(4C).
    awt_ref:         (W, W//4)         column-pool matrix, entries 0.25.
    out_ref:         (1, TH//4, W//4)  this tile's disjoint pooled band.
    """
    C = org_ref.shape[1]
    # Per-channel accumulation: never materializes full (C,TH,W) f32 copies.
    # TODO(synk): on v6e/v7x with bf16 inputs the subtract could stay in bf16
    # (bf16 VALU) before upcasting; kept upcast-first for exact parity.
    diff = org_ref[0, 0].astype(jnp.float32) - enh_ref[0, 0].astype(jnp.float32)
    for c in range(1, C):
        diff = diff + (org_ref[0, c].astype(jnp.float32)
                       - enh_ref[0, c].astype(jnp.float32))
    # 4x4 average pool (+ channel mean, scales folded in) as two MXU matmuls.
    colp = jnp.dot(diff, awt_ref[...], preferred_element_type=jnp.float32)   # (TH, Wp)
    out_ref[0] = jnp.dot(ahk_ref[...], colp, preferred_element_type=jnp.float32)


def _finalize_kernel(d_ref, sl_ref, sr_ref, su_ref, sd_ref, out_ref):
    """sum over 4 directions of (d - shifted(d))**2 for one batch element.

    eye(k=+/-1) shift matmuls give the zero-padded neighbor access of the
    original 3x3 difference convolutions (pooled plane is tiny; MXU is idle).
    """
    d = d_ref[0]                                                             # (Hp, Wp)
    dl = d - jnp.dot(d, sl_ref[...], preferred_element_type=jnp.float32)     # d - d(:, j-1)
    dr = d - jnp.dot(d, sr_ref[...], preferred_element_type=jnp.float32)     # d - d(:, j+1)
    du = d - jnp.dot(su_ref[...], d, preferred_element_type=jnp.float32)     # d - d(i-1, :)
    dd = d - jnp.dot(sd_ref[...], d, preferred_element_type=jnp.float32)     # d - d(i+1, :)
    out_ref[0] = dl * dl + dr * dr + du * du + dd * dd


def _vmem_budgets():
    """(image-tile budget, vmem_limit cap) in bytes, per chip generation."""
    try:
        cap = int(pltpu.get_tpu_info().vmem_capacity_bytes)
    except Exception:
        cap = 64 * 1024 * 1024  # conservative default (v7x per-TC VMEM)
    if cap >= 100 * 1024 * 1024:                    # v5e / v6e: 128 MiB physical
        return 40 * 1024 * 1024, 96 * 1024 * 1024
    return 20 * 1024 * 1024, 48 * 1024 * 1024       # v7x: 64 MiB per TC


def _pick_row_tile(H, C, W, itemsize, tile_budget):
    """Largest row tile whose double-buffered input tiles fit the budget.

    Returns (TH, pad_rows). TH is a multiple of 32 (sublane / packed-dtype /
    pooled-output-band alignment) unless the whole image fits (TH == H).
    Never falls back to an over-budget whole image: pads H instead.
    """
    bytes_per_row = 2 * 2 * C * W * itemsize        # 2 inputs x 2 pipeline bufs
    max_th = tile_budget // max(bytes_per_row, 1)
    if H <= max_th:
        return H, 0
    best = 0
    th = 32
    while th <= max_th:
        if H % th == 0:
            best = th
        th += 32
    if best:
        return best, 0
    # No suitable divisor: pad H up to a multiple of the largest fitting TH.
    # TODO(synk): a masked short last tile would avoid the padding HBM copy.
    th = max(32, (max_th // 32) * 32)
    return th, (-H) % th


@functools.partial(jax.jit, static_argnames=("row_tile",))
def spacial_constancy_loss(org, enhance, row_tile=None):
    """E = sum_dir (conv(pool(mean_c(org)), w) - conv(pool(mean_c(enh)), w))**2."""
    B, C, H, W = org.shape
    assert enhance.shape == org.shape
    assert H % 4 == 0 and W % 4 == 0, (H, W)
    Hp, Wp = H // 4, W // 4
    f32 = jnp.float32
    itemsize = max(jnp.dtype(org.dtype).itemsize, jnp.dtype(enhance.dtype).itemsize)

    tile_budget, vmem_cap = _vmem_budgets()
    if row_tile is None:
        TH, pad = _pick_row_tile(H, C, W, itemsize, tile_budget)
    else:
        TH = int(row_tile)
        pad = (-H) % TH
    if pad:
        org = jnp.pad(org, ((0, 0), (0, 0), (0, pad), (0, 0)))
        enhance = jnp.pad(enhance, ((0, 0), (0, 0), (0, pad), (0, 0)))
    Hpad = H + pad
    KT = Hpad // TH
    Tp = TH // 4
    assert TH % 4 == 0, TH
    assert TH == Hpad or TH % 32 == 0, (TH, Hpad)   # keeps (Tp, Wp) band 8-aligned

    # Row-pool matrix shared by every row band: entry (hp, h) = 1/(4C) iff local
    # row h pools into local output row hp (folds the channel mean).
    ahk = ((jnp.arange(TH, dtype=jnp.int32)[None, :] // 4)
           == jnp.arange(Tp, dtype=jnp.int32)[:, None]).astype(f32) * (1.0 / (4.0 * C))
    # Column-pool matrix (entries 0.25).
    awt = ((jnp.arange(W)[:, None] // 4) == jnp.arange(Wp)[None, :]).astype(f32) * 0.25

    img_spec = pl.BlockSpec((1, C, TH, W), lambda b, k: (b, 0, k, 0))
    # TODO(synk): for tiny images (TH == H, bare DMA stream) pipeline_mode=
    # pl.Buffered(3) on img_spec could hide DMA issue latency; larger tiles
    # dominate everywhere else so the default double-buffering is kept.

    # VMEM estimate: double-buffered image tiles + in-kernel f32 temporaries
    # (diff / per-channel temps / colp) + pooling constants + output band.
    est = (2 * 2 * C * TH * W * itemsize
           + 4 * TH * W * 4
           + TH * Wp * 4
           + 2 * 4 * (Tp * TH + W * Wp)
           + 2 * 4 * Tp * Wp)
    vmem_limit = int(min(max(2 * est, 32 * 1024 * 1024), vmem_cap))

    # Pass 1: pooled channel-mean difference. Each (b, k) writes its own
    # disjoint (Tp, Wp) band -> no accumulation, both axes parallel (megacore).
    pooled = pl.pallas_call(
        _pool_diff_kernel,
        out_shape=jax.ShapeDtypeStruct((B, Hpad // 4, Wp), f32),
        grid_spec=pltpu.PrefetchScalarGridSpec(
            num_scalar_prefetch=0,
            grid=(B, KT),
            in_specs=[
                img_spec, img_spec,
                pl.BlockSpec((Tp, TH), lambda b, k: (0, 0)),
                pl.BlockSpec((W, Wp), lambda b, k: (0, 0)),
            ],
            out_specs=pl.BlockSpec((1, Tp, Wp), lambda b, k: (b, k, 0)),
        ),
        compiler_params=pltpu.CompilerParams(
            dimension_semantics=("parallel", "parallel"),
            vmem_limit_bytes=vmem_limit),
    )(org, enhance, ahk, awt)

    if pad:
        pooled = pooled[:, :Hp, :]   # drop bands produced purely by zero padding

    # Pass 2 (tiny): 4 zero-padded directional differences + square on the
    # (B, Hp, Wp) pooled plane.
    s_l = jnp.eye(Wp, k=1, dtype=f32)    # d @ s_l -> d(:, j-1)
    s_r = jnp.eye(Wp, k=-1, dtype=f32)   # d @ s_r -> d(:, j+1)
    s_u = jnp.eye(Hp, k=-1, dtype=f32)   # s_u @ d -> d(i-1, :)
    s_d = jnp.eye(Hp, k=1, dtype=f32)    # s_d @ d -> d(i+1, :)

    plane_spec = pl.BlockSpec((1, Hp, Wp), lambda b: (b, 0, 0))
    out = pl.pallas_call(
        _finalize_kernel,
        out_shape=jax.ShapeDtypeStruct((B, Hp, Wp), f32),
        grid_spec=pltpu.PrefetchScalarGridSpec(
            num_scalar_prefetch=0,
            grid=(B,),
            in_specs=[
                plane_spec,
                pl.BlockSpec((Wp, Wp), lambda b: (0, 0)),
                pl.BlockSpec((Wp, Wp), lambda b: (0, 0)),
                pl.BlockSpec((Hp, Hp), lambda b: (0, 0)),
                pl.BlockSpec((Hp, Hp), lambda b: (0, 0)),
            ],
            out_specs=plane_spec,
        ),
        compiler_params=pltpu.CompilerParams(
            dimension_semantics=("parallel",)),
    )(pooled, s_l, s_r, s_u, s_d)

    return out.reshape(B, 1, Hp, Wp)   # match the PyTorch (B, 1, H/4, W/4) layout


def _reference(org, enhance):
    """Pure-JAX reference mirroring the PyTorch forward (for correctness check)."""
    def pool_mean(x):
        m = jnp.mean(x.astype(jnp.float32), axis=1, keepdims=True)  # (B,1,H,W)
        Bq, _, Hq, Wq = m.shape
        return jnp.mean(m.reshape(Bq, 1, Hq // 4, 4, Wq // 4, 4), axis=(3, 5))

    def dirs(p):
        zl = jnp.pad(p, ((0, 0), (0, 0), (0, 0), (1, 0)))[..., :, :-1]  # p(:, j-1)
        zr = jnp.pad(p, ((0, 0), (0, 0), (0, 0), (0, 1)))[..., :, 1:]   # p(:, j+1)
        zu = jnp.pad(p, ((0, 0), (0, 0), (1, 0), (0, 0)))[..., :-1, :]  # p(i-1, :)
        zd = jnp.pad(p, ((0, 0), (0, 0), (0, 1), (0, 0)))[..., 1:, :]   # p(i+1, :)
        return (p - zl, p - zr, p - zu, p - zd)

    op, ep = pool_mean(org), pool_mean(enhance)
    return sum((a - b) ** 2 for a, b in zip(dirs(op), dirs(ep)))


if __name__ == "__main__":
    key = jax.random.PRNGKey(0)
    k1, k2, k3, k4 = jax.random.split(key, 4)

    # Case 1: single row tile per image (typical small input).
    B, C, H, W = 2, 4, 16, 16
    org = jax.random.uniform(k1, (B, C, H, W), dtype=jnp.float32)
    enh = jax.random.uniform(k2, (B, C, H, W), dtype=jnp.float32)
    out = spacial_constancy_loss(org, enh)
    jax.block_until_ready(out)
    ref = _reference(org, enh)
    assert out.shape == (B, 1, H // 4, W // 4), out.shape
    assert jnp.allclose(out, ref, rtol=1e-4, atol=1e-5), float(jnp.max(jnp.abs(out - ref)))

    # Case 2: force the multi-row-band path (2 row bands of 32 rows, disjoint
    # output bands, both grid axes parallel).
    B2, C2, H2, W2 = 2, 3, 64, 32
    org2 = jax.random.uniform(k3, (B2, C2, H2, W2), dtype=jnp.float32)
    enh2 = jax.random.uniform(k4, (B2, C2, H2, W2), dtype=jnp.float32)
    out2 = spacial_constancy_loss(org2, enh2, row_tile=32)
    jax.block_until_ready(out2)
    ref2 = _reference(org2, enh2)
    assert out2.shape == (B2, 1, H2 // 4, W2 // 4), out2.shape
    assert jnp.allclose(out2, ref2, rtol=1e-4, atol=1e-5), float(jnp.max(jnp.abs(out2 - ref2)))

    print("KERNEL_OK")
</pallas_src>

<mosaic_0001>
module attributes {stable_mosaic.version = 11 : i64} {
  func.func @_pool_diff_kernel(%arg0: i32, %arg1: i32, %arg2: memref<1x4x16x16xf32, #tpu.memory_space<vmem>>, %arg3: memref<1x4x16x16xf32, #tpu.memory_space<vmem>>, %arg4: memref<4x16xf32, #tpu.memory_space<vmem>>, %arg5: memref<16x4xf32, #tpu.memory_space<vmem>>, %arg6: memref<1x4x4xf32, #tpu.memory_space<vmem>>) attributes {dimension_semantics = [#tpu.dimension_semantics<parallel>, #tpu.dimension_semantics<parallel>], iteration_bounds = array<i64: 2, 1>, scalar_prefetch = 0 : i64, scratch_operands = 0 : i64, tpu.core_type = #tpu.core_type<tc>, window_params = [{transform_indices = @transform_0, window_bounds = array<i64: 1, 4, 16, 16>}, {transform_indices = @transform_1, window_bounds = array<i64: 1, 4, 16, 16>}, {pipeline_mode = #tpu.pipeline_mode<synchronous>, transform_indices = @transform_2, window_bounds = array<i64: 4, 16>}, {pipeline_mode = #tpu.pipeline_mode<synchronous>, transform_indices = @transform_3, window_bounds = array<i64: 16, 4>}, {transform_indices = @transform_4, window_bounds = array<i64: 1, 4, 4>}]} {
    %c0 = arith.constant 0 : index
    %c0_0 = arith.constant 0 : index
    %c0_1 = arith.constant 0 : index
    %c0_2 = arith.constant 0 : index
    %0 = vector.load %arg2[%c0, %c0_0, %c0_1, %c0_2] : memref<1x4x16x16xf32, #tpu.memory_space<vmem>>, vector<1x1x16x16xf32>
    %1 = vector.shape_cast %0 : vector<1x1x16x16xf32> to vector<16x16xf32>
    %c0_3 = arith.constant 0 : index
    %c0_4 = arith.constant 0 : index
    %c0_5 = arith.constant 0 : index
    %c0_6 = arith.constant 0 : index
    %2 = vector.load %arg3[%c0_3, %c0_4, %c0_5, %c0_6] : memref<1x4x16x16xf32, #tpu.memory_space<vmem>>, vector<1x1x16x16xf32>
    %3 = vector.shape_cast %2 : vector<1x1x16x16xf32> to vector<16x16xf32>
    %4 = arith.subf %1, %3 : vector<16x16xf32>
    %c0_7 = arith.constant 0 : index
    %c1 = arith.constant 1 : index
    %c0_8 = arith.constant 0 : index
    %c0_9 = arith.constant 0 : index
    %5 = vector.load %arg2[%c0_7, %c1, %c0_8, %c0_9] : memref<1x4x16x16xf32, #tpu.memory_space<vmem>>, vector<1x1x16x16xf32>
    %6 = vector.shape_cast %5 : vector<1x1x16x16xf32> to vector<16x16xf32>
    %c0_10 = arith.constant 0 : index
    %c1_11 = arith.constant 1 : index
    %c0_12 = arith.constant 0 : index
    %c0_13 = arith.constant 0 : index
    %7 = vector.load %arg3[%c0_10, %c1_11, %c0_12, %c0_13] : memref<1x4x16x16xf32, #tpu.memory_space<vmem>>, vector<1x1x16x16xf32>
    %8 = vector.shape_cast %7 : vector<1x1x16x16xf32> to vector<16x16xf32>
    %9 = arith.subf %6, %8 : vector<16x16xf32>
    %10 = arith.addf %4, %9 : vector<16x16xf32>
    %c0_14 = arith.constant 0 : index
    %c2 = arith.constant 2 : index
    %c0_15 = arith.constant 0 : index
    %c0_16 = arith.constant 0 : index
    %11 = vector.load %arg2[%c0_14, %c2, %c0_15, %c0_16] : memref<1x4x16x16xf32, #tpu.memory_space<vmem>>, vector<1x1x16x16xf32>
    %12 = vector.shape_cast %11 : vector<1x1x16x16xf32> to vector<16x16xf32>
    %c0_17 = arith.constant 0 : index
    %c2_18 = arith.constant 2 : index
    %c0_19 = arith.constant 0 : index
    %c0_20 = arith.constant 0 : index
    %13 = vector.load %arg3[%c0_17, %c2_18, %c0_19, %c0_20] : memref<1x4x16x16xf32, #tpu.memory_space<vmem>>, vector<1x1x16x16xf32>
    %14 = vector.shape_cast %13 : vector<1x1x16x16xf32> to vector<16x16xf32>
    %15 = arith.subf %12, %14 : vector<16x16xf32>
    %16 = arith.addf %10, %15 : vector<16x16xf32>
    %c0_21 = arith.constant 0 : index
    %c3 = arith.constant 3 : index
    %c0_22 = arith.constant 0 : index
    %c0_23 = arith.constant 0 : index
    %17 = vector.load %arg2[%c0_21, %c3, %c0_22, %c0_23] : memref<1x4x16x16xf32, #tpu.memory_space<vmem>>, vector<1x1x16x16xf32>
    %18 = vector.shape_cast %17 : vector<1x1x16x16xf32> to vector<16x16xf32>
    %c0_24 = arith.constant 0 : index
    %c3_25 = arith.constant 3 : index
    %c0_26 = arith.constant 0 : index
    %c0_27 = arith.constant 0 : index
    %19 = vector.load %arg3[%c0_24, %c3_25, %c0_26, %c0_27] : memref<1x4x16x16xf32, #tpu.memory_space<vmem>>, vector<1x1x16x16xf32>
    %20 = vector.shape_cast %19 : vector<1x1x16x16xf32> to vector<16x16xf32>
    %21 = arith.subf %18, %20 : vector<16x16xf32>
    %22 = arith.addf %16, %21 : vector<16x16xf32>
    %c0_28 = arith.constant 0 : index
    %c0_29 = arith.constant 0 : index
    %23 = vector.load %arg5[%c0_28, %c0_29] : memref<16x4xf32, #tpu.memory_space<vmem>>, vector<16x4xf32>
    %cst = arith.constant dense<0.000000e+00> : vector<16x4xf32>
    %24 = tpu.matmul %22, %23, %cst {dimension_numbers = #tpu.dot_dimension_numbers<[1], [0], [0], [1], [0, 0, 1, 1], [], []>} : vector<16x16xf32>, vector<16x4xf32>, vector<16x4xf32> -> vector<16x4xf32>
    %c0_30 = arith.constant 0 : index
    %c0_31 = arith.constant 0 : index
    %25 = vector.load %arg4[%c0_30, %c0_31] : memref<4x16xf32, #tpu.memory_space<vmem>>, vector<4x16xf32>
    %cst_32 = arith.constant dense<0.000000e+00> : vector<4x4xf32>
    %26 = tpu.matmul %25, %24, %cst_32 {dimension_numbers = #tpu.dot_dimension_numbers<[1], [0], [0], [1], [0, 0, 1, 1], [], []>} : vector<4x16xf32>, vector<16x4xf32>, vector<4x4xf32> -> vector<4x4xf32>
    %c0_33 = arith.constant 0 : index
    %c0_34 = arith.constant 0 : index
    %c0_35 = arith.constant 0 : index
    %27 = vector.load %arg6[%c0_33, %c0_34, %c0_35] : memref<1x4x4xf32, #tpu.memory_space<vmem>>, vector<1x4x4xf32>
    %28 = vector.shape_cast %27 : vector<1x4x4xf32> to vector<4x4xf32>
    %29 = vector.shape_cast %26 : vector<4x4xf32> to vector<1x4x4xf32>
    tpu.vector_store %arg6[%c0_33, %c0_34, %c0_35], %29 {strides = array<i32>} : memref<1x4x4xf32, #tpu.memory_space<vmem>>, vector<1x4x4xf32>,
    return
  }
  func.func @transform_0(%arg0: i32, %arg1: i32) -> (i32, i32, i32, i32) {
    %c0_i32 = arith.constant 0 : i32
    %c0_i32_0 = arith.constant 0 : i32
    %c0_i32_1 = arith.constant 0 : i32
    return %arg0, %c0_i32, %arg1, %c0_i32_0 : i32, i32, i32, i32
  }
  func.func @transform_1(%arg0: i32, %arg1: i32) -> (i32, i32, i32, i32) {
    %c0_i32 = arith.constant 0 : i32
    %c0_i32_0 = arith.constant 0 : i32
    %c0_i32_1 = arith.constant 0 : i32
    return %arg0, %c0_i32, %arg1, %c0_i32_0 : i32, i32, i32, i32
  }
  func.func @transform_2(%arg0: i32, %arg1: i32) -> (i32, i32) {
    %c0_i32 = arith.constant 0 : i32
    %c0_i32_0 = arith.constant 0 : i32
    %c0_i32_1 = arith.constant 0 : i32
    return %c0_i32, %c0_i32_0 : i32, i32
  }
  func.func @transform_3(%arg0: i32, %arg1: i32) -> (i32, i32) {
    %c0_i32 = arith.constant 0 : i32
    %c0_i32_0 = arith.constant 0 : i32
    %c0_i32_1 = arith.constant 0 : i32
    return %c0_i32, %c0_i32_0 : i32, i32
  }
  func.func @transform_4(%arg0: i32, %arg1: i32) -> (i32, i32, i32) {
    %c0_i32 = arith.constant 0 : i32
    %c0_i32_0 = arith.constant 0 : i32
    return %arg0, %arg1, %c0_i32 : i32, i32, i32
  }
}

module attributes {stable_mosaic.version = 11 : i64} {
  func.func @_finalize_kernel(%arg0: i32, %arg1: memref<1x4x4xf32, #tpu.memory_space<vmem>>, %arg2: memref<4x4xf32, #tpu.memory_space<vmem>>, %arg3: memref<4x4xf32, #tpu.memory_space<vmem>>, %arg4: memref<4x4xf32, #tpu.memory_space<vmem>>, %arg5: memref<4x4xf32, #tpu.memory_space<vmem>>, %arg6: memref<1x4x4xf32, #tpu.memory_space<vmem>>) attributes {dimension_semantics = [#tpu.dimension_semantics<parallel>], iteration_bounds = array<i64: 2>, scalar_prefetch = 0 : i64, scratch_operands = 0 : i64, tpu.core_type = #tpu.core_type<tc>, window_params = [{transform_indices = @transform_0, window_bounds = array<i64: 1, 4, 4>}, {pipeline_mode = #tpu.pipeline_mode<synchronous>, transform_indices = @transform_1, window_bounds = array<i64: 4, 4>}, {pipeline_mode = #tpu.pipeline_mode<synchronous>, transform_indices = @transform_2, window_bounds = array<i64: 4, 4>}, {pipeline_mode = #tpu.pipeline_mode<synchronous>, transform_indices = @transform_3, window_bounds = array<i64: 4, 4>}, {pipeline_mode = #tpu.pipeline_mode<synchronous>, transform_indices = @transform_4, window_bounds = array<i64: 4, 4>}, {transform_indices = @transform_5, window_bounds = array<i64: 1, 4, 4>}]} {
    %c0 = arith.constant 0 : index
    %c0_0 = arith.constant 0 : index
    %c0_1 = arith.constant 0 : index
    %0 = vector.load %arg1[%c0, %c0_0, %c0_1] : memref<1x4x4xf32, #tpu.memory_space<vmem>>, vector<1x4x4xf32>
    %1 = vector.shape_cast %0 : vector<1x4x4xf32> to vector<4x4xf32>
    %c0_2 = arith.constant 0 : index
    %c0_3 = arith.constant 0 : index
    %2 = vector.load %arg2[%c0_2, %c0_3] : memref<4x4xf32, #tpu.memory_space<vmem>>, vector<4x4xf32>
    %cst = arith.constant dense<0.000000e+00> : vector<4x4xf32>
    %3 = tpu.matmul %1, %2, %cst {dimension_numbers = #tpu.dot_dimension_numbers<[1], [0], [0], [1], [0, 0, 1, 1], [], []>} : vector<4x4xf32>, vector<4x4xf32>, vector<4x4xf32> -> vector<4x4xf32>
    %4 = arith.subf %1, %3 : vector<4x4xf32>
    %c0_4 = arith.constant 0 : index
    %c0_5 = arith.constant 0 : index
    %5 = vector.load %arg3[%c0_4, %c0_5] : memref<4x4xf32, #tpu.memory_space<vmem>>, vector<4x4xf32>
    %cst_6 = arith.constant dense<0.000000e+00> : vector<4x4xf32>
    %6 = tpu.matmul %1, %5, %cst_6 {dimension_numbers = #tpu.dot_dimension_numbers<[1], [0], [0], [1], [0, 0, 1, 1], [], []>} : vector<4x4xf32>, vector<4x4xf32>, vector<4x4xf32> -> vector<4x4xf32>
    %7 = arith.subf %1, %6 : vector<4x4xf32>
    %c0_7 = arith.constant 0 : index
    %c0_8 = arith.constant 0 : index
    %8 = vector.load %arg4[%c0_7, %c0_8] : memref<4x4xf32, #tpu.memory_space<vmem>>, vector<4x4xf32>
    %cst_9 = arith.constant dense<0.000000e+00> : vector<4x4xf32>
    %9 = tpu.matmul %8, %1, %cst_9 {dimension_numbers = #tpu.dot_dimension_numbers<[1], [0], [0], [1], [0, 0, 1, 1], [], []>} : vector<4x4xf32>, vector<4x4xf32>, vector<4x4xf32> -> vector<4x4xf32>
    %10 = arith.subf %1, %9 : vector<4x4xf32>
    %c0_10 = arith.constant 0 : index
    %c0_11 = arith.constant 0 : index
    %11 = vector.load %arg5[%c0_10, %c0_11] : memref<4x4xf32, #tpu.memory_space<vmem>>, vector<4x4xf32>
    %cst_12 = arith.constant dense<0.000000e+00> : vector<4x4xf32>
    %12 = tpu.matmul %11, %1, %cst_12 {dimension_numbers = #tpu.dot_dimension_numbers<[1], [0], [0], [1], [0, 0, 1, 1], [], []>} : vector<4x4xf32>, vector<4x4xf32>, vector<4x4xf32> -> vector<4x4xf32>
    %13 = arith.subf %1, %12 : vector<4x4xf32>
    %14 = arith.mulf %4, %4 : vector<4x4xf32>
    %15 = arith.mulf %7, %7 : vector<4x4xf32>
    %16 = arith.addf %14, %15 : vector<4x4xf32>
    %17 = arith.mulf %10, %10 : vector<4x4xf32>
    %18 = arith.addf %16, %17 : vector<4x4xf32>
    %19 = arith.mulf %13, %13 : vector<4x4xf32>
    %20 = arith.addf %18, %19 : vector<4x4xf32>
    %c0_13 = arith.constant 0 : index
    %c0_14 = arith.constant 0 : index
    %c0_15 = arith.constant 0 : index
    %21 = vector.load %arg6[%c0_13, %c0_14, %c0_15] : memref<1x4x4xf32, #tpu.memory_space<vmem>>, vector<1x4x4xf32>
    %22 = vector.shape_cast %21 : vector<1x4x4xf32> to vector<4x4xf32>
    %23 = vector.shape_cast %20 : vector<4x4xf32> to vector<1x4x4xf32>
    tpu.vector_store %arg6[%c0_13, %c0_14, %c0_15], %23 {strides = array<i32>} : memref<1x4x4xf32, #tpu.memory_space<vmem>>, vector<1x4x4xf32>,
    return
  }
  func.func @transform_0(%arg0: i32) -> (i32, i32, i32) {
    %c0_i32 = arith.constant 0 : i32
    %c0_i32_0 = arith.constant 0 : i32
    %c0_i32_1 = arith.constant 0 : i32
    return %arg0, %c0_i32, %c0_i32_0 : i32, i32, i32
  }
  func.func @transform_1(%arg0: i32) -> (i32, i32) {
    %c0_i32 = arith.constant 0 : i32
    %c0_i32_0 = arith.constant 0 : i32
    %c0_i32_1 = arith.constant 0 : i32
    return %c0_i32, %c0_i32_0 : i32, i32
  }
  func.func @transform_2(%arg0: i32) -> (i32, i32) {
    %c0_i32 = arith.constant 0 : i32
    %c0_i32_0 = arith.constant 0 : i32
    %c0_i32_1 = arith.constant 0 : i32
    return %c0_i32, %c0_i32_0 : i32, i32
  }
  func.func @transform_3(%arg0: i32) -> (i32, i32) {
    %c0_i32 = arith.constant 0 : i32
    %c0_i32_0 = arith.constant 0 : i32
    %c0_i32_1 = arith.constant 0 : i32
    return %c0_i32, %c0_i32_0 : i32, i32
  }
  func.func @transform_4(%arg0: i32) -> (i32, i32) {
    %c0_i32 = arith.constant 0 : i32
    %c0_i32_0 = arith.constant 0 : i32
    %c0_i32_1 = arith.constant 0 : i32
    return %c0_i32, %c0_i32_0 : i32, i32
  }
  func.func @transform_5(%arg0: i32) -> (i32, i32, i32) {
    %c0_i32 = arith.constant 0 : i32
    %c0_i32_0 = arith.constant 0 : i32
    %c0_i32_1 = arith.constant 0 : i32
    return %arg0, %c0_i32, %c0_i32_0 : i32, i32, i32
  }
}

</mosaic_0001>

<llo_original>
// kernel: spacial_constancy_loss.3
$region0: #{spacial_constancy_loss.3}
  #allocation0 [shape = 'u32[]', space=smem, size = 0x4, offset = 0x4, fixed_abs, tag = 'smem constant byte address 0x4 - core index']
  #allocation1 [shape = 'u32[72,128]{1,0:T(1,128)}', space=vmem, size = 0x9000, scoped, tag = 'internal scratch']
  %s0 = inlined_call_operand.vmem [shape: f32[2,4,4], index: 0, kind: input, shape index: {}]
  %s1 = inlined_call_operand.vmem [shape: f32[4,4], index: 1, kind: input, shape index: {}, may-alias: {1,4}]
  %s2 = inlined_call_operand.vmem [shape: f32[4,4], index: 2, kind: input, shape index: {}, may-alias: {2,3}]
  %s3 = inlined_call_operand.vmem [shape: f32[4,4], index: 3, kind: input, shape index: {}, may-alias: {2,3}]
  %s4 = inlined_call_operand.vmem [shape: f32[4,4], index: 4, kind: input, shape index: {}, may-alias: {1,4}]
  %s5 = inlined_call_operand.hbm [shape: f32[2,4,4], index: 5, kind: output, shape index: {}]
  %s6 = sld [smem:[#allocation0]]
  $region53: #{spacial_constancy_loss.3} parent=0
    _
  %s8 = ssub.s32 1, %s6
  %s9 = scalar_select 0, %s8, %s6
  $region1: #{spacial_constancy_loss.3} parent=0
    #allocation2 [shape = 'u8[4096]{0}', space=vmem, size = 0x1000, scoped, tag = 'output window, operand 0']
    #allocation3 [shape = 's32[2]{0}', space=sflag, size = 0x8, scoped, tag = 'scoped memory for spacial_constancy_loss.3']
    %10 = vsyncpa [#allocation3], 0
    %s11 = scalar_lea.sflag [#allocation3], 1
    %12 = vsyncpa %s11, 0
    loop: start=0, step=1, limit=4
    $region2: #{spacial_constancy_loss.3} parent=1 // loop_pre_header
      _
    $region3: #{spacial_constancy_loss.3} parent=1 // loop_header
      %s14 = sphi 0, %s18
      %p15 = scmp.ge.s32.totalorder %s14, 4
      %s24 = sphi 0, %s26
      %s27 = sphi 0, %s24
      %s28 = sphi 0, %s27
      %s44 = sphi 0, %s28
      %s48 = sphi 0, %s48
      %s50 = sphi 0, %s48
      %s51 = sphi 0, %s50
      %s65 = sphi 0, %s51
      %s69 = sphi 0, %s69
      %s71 = sphi 0, %s69
      %s72 = sphi 0, %s71
      %s86 = sphi 0, %s72
      %s90 = sphi 0, %s90
      %s92 = sphi 0, %s90
      %s93 = sphi 0, %s92
      %s107 = sphi 0, %s93
      %s111 = sphi 0, %s111
      %s113 = sphi 0, %s111
      %s114 = sphi 0, %s113
      %s128 = sphi 0, %s114
      %s134 = sphi 0, %s136
      %s137 = sphi 0, %s134
      %s138 = sphi 0, %s137
      %s154 = sphi 0, %s138
    $region4: #{spacial_constancy_loss.3} parent=1 // loop_header_branch
      %17 = sbr.rel (%p15) target = $region8
    $region5: #{spacial_constancy_loss.3} parent=1 // loop_body
      %s19 = ssub.s32 %s14, 1
      %s20 = ssub.s32 %s14, 2
      %s21 = sadd.s32 %s14, 1
      %s22 = ssub.s32 %s14, %s21
      %p23 = scmp.eq.s32.totalorder %s22, 0
      %s25 = sadd.s32 %s24, 1
      %s26 = scalar_select %p23, %s24, %s25
      %p29 = pneg %p23
      %p30 = scmp.eq.s32.totalorder %s14, 1
      %p31 = por %p29, %p30
      %p32 = scmp.ne.s32.totalorder %s24, %s27
      %p33 = scmp.eq.s32.totalorder %s14, 0
      %p34 = por %p32, %p33
      %p35 = scmp.ne.s32.totalorder %s24, %s27
      %p36 = scmp.eq.s32.totalorder %s19, 1
      %p37 = por %p35, %p36
      %p38 = scmp.ne.s32.totalorder %s27, %s28
      %p39 = scmp.eq.s32.totalorder %s19, 0
      %p40 = por %p38, %p39
      %p41 = scmp.ne.s32.totalorder %s27, %s28
      %p42 = scmp.eq.s32.totalorder %s20, 1
      %p43 = por %p41, %p42
      %p45 = scmp.ne.s32.totalorder %s28, %s44
      %p46 = scmp.eq.s32.totalorder %s20, 0
      %p47 = por %p45, %p46
      %s49 = sadd.s32 %s48, 1
      %p52 = scmp.eq.s32.totalorder %s14, 1
      %p53 = scmp.ne.s32.totalorder %s48, %s50
      %p54 = scmp.eq.s32.totalorder %s14, 0
      %p55 = por %p53, %p54
      %p56 = scmp.ne.s32.totalorder %s48, %s50
      %p57 = scmp.eq.s32.totalorder %s19, 1
      %p58 = por %p56, %p57
      %p59 = scmp.ne.s32.totalorder %s50, %s51
      %p60 = scmp.eq.s32.totalorder %s19, 0
      %p61 = por %p59, %p60
      %p62 = scmp.ne.s32.totalorder %s50, %s51
      %p63 = scmp.eq.s32.totalorder %s20, 1
      %p64 = por %p62, %p63
      %p66 = scmp.ne.s32.totalorder %s51, %s65
      %p67 = scmp.eq.s32.totalorder %s20, 0
      %p68 = por %p66, %p67
      %s70 = sadd.s32 %s69, 1
      %p73 = scmp.eq.s32.totalorder %s14, 1
      %p74 = scmp.ne.s32.totalorder %s69, %s71
      %p75 = scmp.eq.s32.totalorder %s14, 0
      %p76 = por %p74, %p75
      %p77 = scmp.ne.s32.totalorder %s69, %s71
      %p78 = scmp.eq.s32.totalorder %s19, 1
      %p79 = por %p77, %p78
      %p80 = scmp.ne.s32.totalorder %s71, %s72
      %p81 = scmp.eq.s32.totalorder %s19, 0
      %p82 = por %p80, %p81
      %p83 = scmp.ne.s32.totalorder %s71, %s72
      %p84 = scmp.eq.s32.totalorder %s20, 1
      %p85 = por %p83, %p84
      %p87 = scmp.ne.s32.totalorder %s72, %s86
      %p88 = scmp.eq.s32.totalorder %s20, 0
      %p89 = por %p87, %p88
      %s91 = sadd.s32 %s90, 1
      %p94 = scmp.eq.s32.totalorder %s14, 1
      %p95 = scmp.ne.s32.totalorder %s90, %s92
      %p96 = scmp.eq.s32.totalorder %s14, 0
      %p97 = por %p95, %p96
      %p98 = scmp.ne.s32.totalorder %s90, %s92
      %p99 = scmp.eq.s32.totalorder %s19, 1
      %p100 = por %p98, %p99
      %p101 = scmp.ne.s32.totalorder %s92, %s93
      %p102 = scmp.eq.s32.totalorder %s19, 0
      %p103 = por %p101, %p102
      %p104 = scmp.ne.s32.totalorder %s92, %s93
      %p105 = scmp.eq.s32.totalorder %s20, 1
      %p106 = por %p104, %p105
      %p108 = scmp.ne.s32.totalorder %s93, %s107
      %p109 = scmp.eq.s32.totalorder %s20, 0
      %p110 = por %p108, %p109
      %s112 = sadd.s32 %s111, 1
      %p115 = scmp.eq.s32.totalorder %s14, 1
      %p116 = scmp.ne.s32.totalorder %s111, %s113
      %p117 = scmp.eq.s32.totalorder %s14, 0
      %p118 = por %p116, %p117
      %p119 = scmp.ne.s32.totalorder %s111, %s113
      %p120 = scmp.eq.s32.totalorder %s19, 1
      %p121 = por %p119, %p120
      %p122 = scmp.ne.s32.totalorder %s113, %s114
      %p123 = scmp.eq.s32.totalorder %s19, 0
      %p124 = por %p122, %p123
      %p125 = scmp.ne.s32.totalorder %s113, %s114
      %p126 = scmp.eq.s32.totalorder %s20, 1
      %p127 = por %p125, %p126
      %p129 = scmp.ne.s32.totalorder %s114, %s128
      %p130 = scmp.eq.s32.totalorder %s20, 0
      %p131 = por %p129, %p130
      %s132 = ssub.s32 %s14, %s21
      %p133 = scmp.eq.s32.totalorder %s132, 0
      %s135 = sadd.s32 %s134, 1
      %s136 = scalar_select %p133, %s134, %s135
      %p139 = pneg %p133
      %p140 = scmp.eq.s32.totalorder %s14, 1
      %p141 = por %p139, %p140
      %p142 = scmp.ne.s32.totalorder %s134, %s137
      %p143 = scmp.eq.s32.totalorder %s14, 0
      %p144 = por %p142, %p143
      %p145 = scmp.ne.s32.totalorder %s134, %s137
      %p146 = scmp.eq.s32.totalorder %s19, 1
      %p147 = por %p145, %p146
      %p148 = scmp.ne.s32.totalorder %s137, %s138
      %p149 = scmp.eq.s32.totalorder %s19, 0
      %p150 = por %p148, %p149
      %p151 = scmp.ne.s32.totalorder %s137, %s138
      %p152 = scmp.eq.s32.totalorder %s20, 1
      %p153 = por %p151, %p152
      %p155 = scmp.ne.s32.totalorder %s138, %s154
      %p156 = scmp.eq.s32.totalorder %s20, 0
      %p157 = por %p155, %p156
      %p158 = scmp.le.s32.totalorder 1, %s14
      %p159 = scmp.lt.s32.totalorder %s14, 3
      %p160 = pnand %p158, %p159
      %p161 = pneg %p160
      // Predicated region
      $region9: #{spacial_constancy_loss.3} parent=5 // pred_check
        _
      $region10: #{spacial_constancy_loss.3} parent=5 // pred_check_branch
        %163 = sbr.rel (%p160) target = $region12
      $region11: #{spacial_constancy_loss.3} parent=5 // pred_region
        %s164 = ssub.s32 %s14, 1
        // Predicated region
        $region13: #{spacial_constancy_loss.3} parent=11 // pred_check
          %p165 = pneg %p61
        $region14: #{spacial_constancy_loss.3} parent=11 // pred_check_branch
          %167 = sbr.rel (%p165) target = $region16
        $region15: #{spacial_constancy_loss.3} parent=11 // pred_region
          _
        $region16: #{spacial_constancy_loss.3} parent=11 // pred_fallthru
          _
        // Predicated region
        $region17: #{spacial_constancy_loss.3} parent=11 // pred_check
          %p168 = pneg %p82
        $region18: #{spacial_constancy_loss.3} parent=11 // pred_check_branch
          %170 = sbr.rel (%p168) target = $region20
        $region19: #{spacial_constancy_loss.3} parent=11 // pred_region
          _
        $region20: #{spacial_constancy_loss.3} parent=11 // pred_fallthru
          _
        // Predicated region
        $region21: #{spacial_constancy_loss.3} parent=11 // pred_check
          %p171 = pneg %p103
        $region22: #{spacial_constancy_loss.3} parent=11 // pred_check_branch
          %173 = sbr.rel (%p171) target = $region24
        $region23: #{spacial_constancy_loss.3} parent=11 // pred_region
          _
        $region24: #{spacial_constancy_loss.3} parent=11 // pred_fallthru
          _
        // Predicated region
        $region25: #{spacial_constancy_loss.3} parent=11 // pred_check
          %p174 = pneg %p124
        $region26: #{spacial_constancy_loss.3} parent=11 // pred_check_branch
          %176 = sbr.rel (%p174) target = $region28
        $region27: #{spacial_constancy_loss.3} parent=11 // pred_region
          _
        $region28: #{spacial_constancy_loss.3} parent=11 // pred_fallthru
          _
      $region12: #{spacial_constancy_loss.3} parent=5 // pred_fallthru
        _
      %p177 = scmp.lt.s32.totalorder %s14, 2
      // Predicated region
      $region29: #{spacial_constancy_loss.3} parent=5 // pred_check
        %p178 = pneg %p177
      $region30: #{spacial_constancy_loss.3} parent=5 // pred_check_branch
        %180 = sbr.rel (%p178) target = $region32
      $region31: #{spacial_constancy_loss.3} parent=5 // pred_region
        // Predicated region
        $region33: #{spacial_constancy_loss.3} parent=31 // pred_check
          %p181 = pneg %p34
        $region34: #{spacial_constancy_loss.3} parent=31 // pred_check_branch
          %183 = sbr.rel (%p181) target = $region36
        $region35: #{spacial_constancy_loss.3} parent=31 // pred_region
          %p184 = scmp.lt.s32.totalorder %s14, 1
          %s185 = scalar_select %p184, %s14, 1
          %s186 = smul.addr %s185, 4
          %s187 = scalar_lea.vmem %s0, %s186
        $region36: #{spacial_constancy_loss.3} parent=31 // pred_fallthru
          _
      $region32: #{spacial_constancy_loss.3} parent=5 // pred_fallthru
        _
      %p188 = scmp.le.s32.totalorder 1, %s14
      %p189 = scmp.lt.s32.totalorder %s14, 3
      %p190 = pnand %p188, %p189
      %p191 = pneg %p190
      // Predicated region
      $region37: #{spacial_constancy_loss.3} parent=5 // pred_check
        _
      $region38: #{spacial_constancy_loss.3} parent=5 // pred_check_branch
        %193 = sbr.rel (%p190) target = $region40
      $region39: #{spacial_constancy_loss.3} parent=5 // pred_region
        %s194 = ssub.s32 %s14, 1
        %p195 = scmp.lt.s32.totalorder %s19, 1
        %s196 = scalar_select %p195, %s19, 1
        %s197 = smul.addr %s196, 4
        %s198 = scalar_lea.vmem %s0, %s197
        %p199 = pneg %p40
        %p200 = pneg %p37
        %p201 = pneg %p61
        %p202 = pneg %p58
        %p203 = pneg %p82
        %p204 = pneg %p79
        %p205 = pneg %p103
        %p206 = pneg %p100
        %p207 = pneg %p124
        %p208 = pneg %p121
        %p209 = pneg %p150
        %p210 = pneg %p147
        %s211 = sand.u32 %s137, 1
        %s212 = scalar_lea.sflag [#allocation3], %s211
        %s213 = sand.u32 %s137, 1
        %s214 = smul.addr %s213, 4
        %s215 = scalar_lea.vmem [#allocation2], %s214
        %p216 = scmp.lt.s32.totalorder %s19, 1
        %s217 = scalar_select %p216, %s19, 1
        %s218 = smul.addr %s217, 4
        %s219 = scalar_lea.vmem %s0, %s218
        %v220 = vld [vmem:[%s219] sm:$0xf]
        %v221 = vld [vmem:[%s1] sm:$0xf]
        %vm222 = vcmask 31744
        %v224 = vsel %vm222, %v220, 0
        %vm226 = vcmask 1043456
        %v228 = vsel %vm226, %v221, 0
        %230 = vmatpush.msra.mxu0 0.0
        %231 = vmatpush.msra.mxu0 0.0
        %232 = vmatpush.msra.mxu0 0.0
        %233 = vmatpush.msra.mxu0 0.0
        %234 = vmatpush.msra.mxu0 0.0
        %235 = vmatpush.msra.mxu0 0.0
        %236 = vmatpush.msra.mxu0 0.0
        %237 = vmatpush.msra.mxu0 0.0
        %238 = vmatpush.msra.mxu0 0.0
        %239 = vmatpush.msra.mxu0 0.0
        %240 = vmatpush.msra.mxu0 0.0
        %241 = vmatpush.msra.mxu0 0.0
        %242 = vmatpush.msra.mxu0 0.0
        %243 = vmatpush.msra.mxu0 0.0
        %244 = vmatpush.msra.mxu0 0.0
        %245 = vmatpush.msra.mxu0 %v228
        %246 = vmatmul.f32.gmra.mxu0 %v224
        %v247 = vpop.f32.mrf.mxu0
        %v248 = vadd.f32 0.0, %v247
        %249 = vdwg.mxu0
        %v250 = vsub.f32 %v220, %v248
        %v251 = vld [vmem:[%s2] sm:$0xf]
        %v253 = vsel %vm226, %v251, 0
        %255 = vmatpush.msra.mxu0 0.0
        %256 = vmatpush.msra.mxu0 0.0
        %257 = vmatpush.msra.mxu0 0.0
        %258 = vmatpush.msra.mxu0 0.0
        %259 = vmatpush.msra.mxu0 0.0
        %260 = vmatpush.msra.mxu0 0.0
        %261 = vmatpush.msra.mxu0 0.0
        %262 = vmatpush.msra.mxu0 0.0
        %263 = vmatpush.msra.mxu0 0.0
        %264 = vmatpush.msra.mxu0 0.0
        %265 = vmatpush.msra.mxu0 0.0
        %266 = vmatpush.msra.mxu0 0.0
        %267 = vmatpush.msra.mxu0 0.0
        %268 = vmatpush.msra.mxu0 0.0
        %269 = vmatpush.msra.mxu0 0.0
        %270 = vmatpush.msra.mxu0 %v253
        %271 = vmatmul.f32.gmra.mxu0 %v224
        %v272 = vpop.f32.mrf.mxu0
        %v273 = vadd.f32 0.0, %v272
        %274 = vdwg.mxu0
        %v275 = vsub.f32 %v220, %v273
        %v276 = vld [vmem:[%s3] sm:$0xf]
        %v278 = vsel %vm222, %v276, 0
        %v280 = vsel %vm226, %v220, 0
        %282 = vmatpush.msra.mxu0 0.0
        %283 = vmatpush.msra.mxu0 0.0
        %284 = vmatpush.msra.mxu0 0.0
        %285 = vmatpush.msra.mxu0 0.0
        %286 = vmatpush.msra.mxu0 0.0
        %287 = vmatpush.msra.mxu0 0.0
        %288 = vmatpush.msra.mxu0 0.0
        %289 = vmatpush.msra.mxu0 0.0
        %290 = vmatpush.msra.mxu0 0.0
        %291 = vmatpush.msra.mxu0 0.0
        %292 = vmatpush.msra.mxu0 0.0
        %293 = vmatpush.msra.mxu0 0.0
        %294 = vmatpush.msra.mxu0 0.0
        %295 = vmatpush.msra.mxu0 0.0
        %296 = vmatpush.msra.mxu0 0.0
        %297 = vmatpush.msra.mxu0 %v280
        %298 = vmatmul.f32.gmra.mxu0 %v278
        %v299 = vpop.f32.mrf.mxu0
        %v300 = vadd.f32 0.0, %v299
        %301 = vdwg.mxu0
        %v302 = vsub.f32 %v220, %v300
        %v303 = vld [vmem:[%s4] sm:$0xf]
        %v305 = vsel %vm222, %v303, 0
        %307 = vmatpush.msra.mxu0 0.0
        %308 = vmatpush.msra.mxu0 0.0
        %309 = vmatpush.msra.mxu0 0.0
        %310 = vmatpush.msra.mxu0 0.0
        %311 = vmatpush.msra.mxu0 0.0
        %312 = vmatpush.msra.mxu0 0.0
        %313 = vmatpush.msra.mxu0 0.0
        %314 = vmatpush.msra.mxu0 0.0
        %315 = vmatpush.msra.mxu0 0.0
        %316 = vmatpush.msra.mxu0 0.0
        %317 = vmatpush.msra.mxu0 0.0
        %318 = vmatpush.msra.mxu0 0.0
        %319 = vmatpush.msra.mxu0 0.0
        %320 = vmatpush.msra.mxu0 0.0
        %321 = vmatpush.msra.mxu0 0.0
        %322 = vmatpush.msra.mxu0 %v280
        %323 = vmatmul.f32.gmra.mxu0 %v305
        %v324 = vpop.f32.mrf.mxu0
        %v325 = vadd.f32 0.0, %v324
        %326 = vdwg.mxu0
        %v327 = vsub.f32 %v220, %v325
        %v328 = vmul.f32 %v250, %v250
        %v329 = vmul.f32 %v275, %v275
        %v330 = vadd.f32 %v328, %v329
        %v331 = vmul.f32 %v302, %v302
        %v332 = vadd.f32 %v330, %v331
        %v333 = vmul.f32 %v327, %v327
        %v334 = vadd.f32 %v332, %v333
        %vm335 = vcmask 27648
        %336 = vst.msk [vmem:[%s215] sm:$0xf] %vm335, %v334
        %s337 = sand.u32 %s137, 1
        %s338 = scalar_lea.sflag [#allocation3], %s337
        %s339 = sand.u32 %s137, 1
        %s340 = smul.addr %s339, 4
        %s341 = scalar_lea.vmem [#allocation2], %s340
        // Predicated region
        $region41: #{spacial_constancy_loss.3} parent=39 // pred_check
          %p342 = pneg %p147
        $region42: #{spacial_constancy_loss.3} parent=39 // pred_check_branch
          %344 = sbr.rel (%p342) target = $region44
        $region43: #{spacial_constancy_loss.3} parent=39 // pred_region
          %346 = vsyncadd %s338, 0
          %s347 = smul.addr %s19, 4
          %s348 = scalar_lea.hbm %s5, %s347
          %s350 = sshll.u32 %s341, 4
          %s351 = int_to_ptr.vmem [resolvable:$true] %s350
          %s352 = sshll.u32 %s348, 4
          %s353 = int_to_ptr.hbm [resolvable:$true] %s352
          %355 = dma.vmem_to_hbm [thread:$0]  %s351, 64, %s353, %s338
        $region44: #{spacial_constancy_loss.3} parent=39 // pred_fallthru
          _
      $region40: #{spacial_constancy_loss.3} parent=5 // pred_fallthru
        _
      %p356 = scmp.le.s32.totalorder 2, %s14
      // Predicated region
      $region45: #{spacial_constancy_loss.3} parent=5 // pred_check
        %p357 = pneg %p356
      $region46: #{spacial_constancy_loss.3} parent=5 // pred_check_branch
        %359 = sbr.rel (%p357) target = $region48
      $region47: #{spacial_constancy_loss.3} parent=5 // pred_region
        %s360 = ssub.s32 %s14, 2
        // Predicated region
        $region49: #{spacial_constancy_loss.3} parent=47 // pred_check
          %p361 = pneg %p153
        $region50: #{spacial_constancy_loss.3} parent=47 // pred_check_branch
          %363 = sbr.rel (%p361) target = $region52
        $region51: #{spacial_constancy_loss.3} parent=47 // pred_region
          %s364 = sand.u32 %s138, 1
          %s365 = scalar_lea.sflag [#allocation3], %s364
          %s366 = sand.u32 %s138, 1
          %s367 = smul.addr %s366, 4
          %s368 = scalar_lea.vmem [#allocation2], %s367
          %370 = dma.done %s365, 64
        $region52: #{spacial_constancy_loss.3} parent=47 // pred_fallthru
          _
      $region48: #{spacial_constancy_loss.3} parent=5 // pred_fallthru
        _
    $region6: #{spacial_constancy_loss.3} parent=1 // loop_footer
      %s18 = sadd.s32 1, %s14
    $region7: #{spacial_constancy_loss.3} parent=1 // loop_footer_branch
      %13 = sbr.rel target = $region3
    $region8: #{spacial_constancy_loss.3} parent=1 // loop_exit
      _
    %371 = vsyncpa [#allocation3], 1
    %s372 = scalar_lea.sflag [#allocation3], 1
    %373 = vsyncpa %s372, 1

// kernel: spacial_constancy_loss.2
$region0: #{spacial_constancy_loss.2}
  #allocation0 [shape = 'u32[]', space=smem, size = 0x4, offset = 0x4, fixed_abs, tag = 'smem constant byte address 0x4 - core index']
  #allocation1 [shape = 'u32[72,128]{1,0:T(1,128)}', space=vmem, size = 0x9000, scoped, tag = 'internal scratch']
  %s0 = inlined_call_operand.hbm [shape: f32[2,4,16,16], index: 0, kind: input, shape index: {}]
  %s1 = inlined_call_operand.hbm [shape: f32[2,4,16,16], index: 1, kind: input, shape index: {}]
  %s2 = inlined_call_operand.vmem [shape: f32[4,16], index: 2, kind: input, shape index: {}]
  %s3 = inlined_call_operand.vmem [shape: f32[16,4], index: 3, kind: input, shape index: {}]
  %s4 = inlined_call_operand.vmem [shape: f32[2,4,4], index: 4, kind: output, shape index: {}]
  %s5 = sld [smem:[#allocation0]]
  $region57: #{spacial_constancy_loss.2} parent=0
    _
  %s7 = ssub.s32 1, %s5
  %s8 = scalar_select 0, %s7, %s5
  $region1: #{spacial_constancy_loss.2} parent=0
    #allocation2 [shape = 'u8[65536]{0}', space=vmem, size = 0x10000, scoped, tag = 'input window, operand 0']
    #allocation3 [shape = 's32[2]{0}', space=sflag, size = 0x8, scoped, tag = 'scoped memory for spacial_constancy_loss.2']
    #allocation4 [shape = 'u8[65536]{0}', space=vmem, size = 0x10000, scoped, tag = 'input window, operand 1']
    #allocation5 [shape = 's32[2]{0}', space=sflag, size = 0x8, scoped, tag = 'scoped memory for spacial_constancy_loss.2']
    %9 = vsyncpa [#allocation3], 0
    %s10 = scalar_lea.sflag [#allocation3], 1
    %11 = vsyncpa %s10, 0
    %12 = vsyncpa [#allocation5], 0
    %s13 = scalar_lea.sflag [#allocation5], 1
    %14 = vsyncpa %s13, 0
    loop: start=0, step=1, limit=4
    $region2: #{spacial_constancy_loss.2} parent=1 // loop_pre_header
      _
    $region3: #{spacial_constancy_loss.2} parent=1 // loop_header
      %s16 = sphi 0, %s20
      %p17 = scmp.ge.s32.totalorder %s16, 4
      %s23 = sphi 0, %s35
      %s24 = sphi 0, %s31
      %s25 = sphi 0, %s23
      %s26 = sphi 0, %s24
      %s27 = sphi 0, %s25
      %s28 = sphi 0, %s26
      %s40 = sphi 0, %s42
      %s43 = sphi 0, %s40
      %s44 = sphi 0, %s43
      %s60 = sphi 0, %s44
      %s68 = sphi 0, %s70
      %s71 = sphi 0, %s68
      %s72 = sphi 0, %s71
      %s88 = sphi 0, %s72
      %s92 = sphi 0, %s92
      %s94 = sphi 0, %s92
      %s95 = sphi 0, %s94
      %s109 = sphi 0, %s95
      %s113 = sphi 0, %s113
      %s115 = sphi 0, %s113
      %s116 = sphi 0, %s115
      %s130 = sphi 0, %s116
      %s138 = sphi 0, %s140
      %s141 = sphi 0, %s138
      %s142 = sphi 0, %s141
      %s158 = sphi 0, %s142
    $region4: #{spacial_constancy_loss.2} parent=1 // loop_header_branch
      %19 = sbr.rel (%p17) target = $region8
    $region5: #{spacial_constancy_loss.2} parent=1 // loop_body
      %s21 = ssub.s32 %s16, 1
      %s22 = ssub.s32 %s16, 2
      %s29 = sadd.s32 1, %s24
      %p30 = scmp.ge.s32.totalorder %s29, 1
      %s31 = scalar_select %p30, 0, %s29
      %s32 = sadd.s32 1, %s23
      %s33 = scalar_select %p30, %s32, %s23
      %p34 = scmp.ge.s32.totalorder %s33, 2
      %s35 = scalar_select %p34, 0, %s33
      %s36 = ssub.s32 %s23, %s35
      %s37 = ssub.s32 %s24, %s31
      %s38 = sor.u32 %s36, %s37
      %p39 = scmp.eq.s32.totalorder %s38, 0
      %s41 = sadd.s32 %s40, 1
      %s42 = scalar_select %p39, %s40, %s41
      %p45 = pneg %p39
      %p46 = scmp.eq.s32.totalorder %s16, 1
      %p47 = por %p45, %p46
      %p48 = scmp.ne.s32.totalorder %s40, %s43
      %p49 = scmp.eq.s32.totalorder %s16, 0
      %p50 = por %p48, %p49
      %p51 = scmp.ne.s32.totalorder %s40, %s43
      %p52 = scmp.eq.s32.totalorder %s21, 1
      %p53 = por %p51, %p52
      %p54 = scmp.ne.s32.totalorder %s43, %s44
      %p55 = scmp.eq.s32.totalorder %s21, 0
      %p56 = por %p54, %p55
      %p57 = scmp.ne.s32.totalorder %s43, %s44
      %p58 = scmp.eq.s32.totalorder %s22, 1
      %p59 = por %p57, %p58
      %p61 = scmp.ne.s32.totalorder %s44, %s60
      %p62 = scmp.eq.s32.totalorder %s22, 0
      %p63 = por %p61, %p62
      %s64 = ssub.s32 %s23, %s35
      %s65 = ssub.s32 %s24, %s31
      %s66 = sor.u32 %s64, %s65
      %p67 = scmp.eq.s32.totalorder %s66, 0
      %s69 = sadd.s32 %s68, 1
      %s70 = scalar_select %p67, %s68, %s69
      %p73 = pneg %p67
      %p74 = scmp.eq.s32.totalorder %s16, 1
      %p75 = por %p73, %p74
      %p76 = scmp.ne.s32.totalorder %s68, %s71
      %p77 = scmp.eq.s32.totalorder %s16, 0
      %p78 = por %p76, %p77
      %p79 = scmp.ne.s32.totalorder %s68, %s71
      %p80 = scmp.eq.s32.totalorder %s21, 1
      %p81 = por %p79, %p80
      %p82 = scmp.ne.s32.totalorder %s71, %s72
      %p83 = scmp.eq.s32.totalorder %s21, 0
      %p84 = por %p82, %p83
      %p85 = scmp.ne.s32.totalorder %s71, %s72
      %p86 = scmp.eq.s32.totalorder %s22, 1
      %p87 = por %p85, %p86
      %p89 = scmp.ne.s32.totalorder %s72, %s88
      %p90 = scmp.eq.s32.totalorder %s22, 0
      %p91 = por %p89, %p90
      %s93 = sadd.s32 %s92, 1
      %p96 = scmp.eq.s32.totalorder %s16, 1
      %p97 = scmp.ne.s32.totalorder %s92, %s94
      %p98 = scmp.eq.s32.totalorder %s16, 0
      %p99 = por %p97, %p98
      %p100 = scmp.ne.s32.totalorder %s92, %s94
      %p101 = scmp.eq.s32.totalorder %s21, 1
      %p102 = por %p100, %p101
      %p103 = scmp.ne.s32.totalorder %s94, %s95
      %p104 = scmp.eq.s32.totalorder %s21, 0
      %p105 = por %p103, %p104
      %p106 = scmp.ne.s32.totalorder %s94, %s95
      %p107 = scmp.eq.s32.totalorder %s22, 1
      %p108 = por %p106, %p107
      %p110 = scmp.ne.s32.totalorder %s95, %s109
      %p111 = scmp.eq.s32.totalorder %s22, 0
      %p112 = por %p110, %p111
      %s114 = sadd.s32 %s113, 1
      %p117 = scmp.eq.s32.totalorder %s16, 1
      %p118 = scmp.ne.s32.totalorder %s113, %s115
      %p119 = scmp.eq.s32.totalorder %s16, 0
      %p120 = por %p118, %p119
      %p121 = scmp.ne.s32.totalorder %s113, %s115
      %p122 = scmp.eq.s32.totalorder %s21, 1
      %p123 = por %p121, %p122
      %p124 = scmp.ne.s32.totalorder %s115, %s116
      %p125 = scmp.eq.s32.totalorder %s21, 0
      %p126 = por %p124, %p125
      %p127 = scmp.ne.s32.totalorder %s115, %s116
      %p128 = scmp.eq.s32.totalorder %s22, 1
      %p129 = por %p127, %p128
      %p131 = scmp.ne.s32.totalorder %s116, %s130
      %p132 = scmp.eq.s32.totalorder %s22, 0
      %p133 = por %p131, %p132
      %s134 = ssub.s32 %s23, %s35
      %s135 = ssub.s32 %s24, %s31
      %s136 = sor.u32 %s134, %s135
      %p137 = scmp.eq.s32.totalorder %s136, 0
      %s139 = sadd.s32 %s138, 1
      %s140 = scalar_select %p137, %s138, %s139
      %p143 = pneg %p137
      %p144 = scmp.eq.s32.totalorder %s16, 1
      %p145 = por %p143, %p144
      %p146 = scmp.ne.s32.totalorder %s138, %s141
      %p147 = scmp.eq.s32.totalorder %s16, 0
      %p148 = por %p146, %p147
      %p149 = scmp.ne.s32.totalorder %s138, %s141
      %p150 = scmp.eq.s32.totalorder %s21, 1
      %p151 = por %p149, %p150
      %p152 = scmp.ne.s32.totalorder %s141, %s142
      %p153 = scmp.eq.s32.totalorder %s21, 0
      %p154 = por %p152, %p153
      %p155 = scmp.ne.s32.totalorder %s141, %s142
      %p156 = scmp.eq.s32.totalorder %s22, 1
      %p157 = por %p155, %p156
      %p159 = scmp.ne.s32.totalorder %s142, %s158
      %p160 = scmp.eq.s32.totalorder %s22, 0
      %p161 = por %p159, %p160
      %p162 = scmp.le.s32.totalorder 1, %s16
      %p163 = scmp.lt.s32.totalorder %s16, 3
      %p164 = pnand %p162, %p163
      %p165 = pneg %p164
      // Predicated region
      $region9: #{spacial_constancy_loss.2} parent=5 // pred_check
        _
      $region10: #{spacial_constancy_loss.2} parent=5 // pred_check_branch
        %167 = sbr.rel (%p164) target = $region12
      $region11: #{spacial_constancy_loss.2} parent=5 // pred_region
        %s168 = ssub.s32 %s16, 1
        // Predicated region
        $region13: #{spacial_constancy_loss.2} parent=11 // pred_check
          %p169 = pneg %p105
        $region14: #{spacial_constancy_loss.2} parent=11 // pred_check_branch
          %171 = sbr.rel (%p169) target = $region16
        $region15: #{spacial_constancy_loss.2} parent=11 // pred_region
          _
        $region16: #{spacial_constancy_loss.2} parent=11 // pred_fallthru
          _
        // Predicated region
        $region17: #{spacial_constancy_loss.2} parent=11 // pred_check
          %p172 = pneg %p126
        $region18: #{spacial_constancy_loss.2} parent=11 // pred_check_branch
          %174 = sbr.rel (%p172) target = $region20
        $region19: #{spacial_constancy_loss.2} parent=11 // pred_region
          _
        $region20: #{spacial_constancy_loss.2} parent=11 // pred_fallthru
          _
      $region12: #{spacial_constancy_loss.2} parent=5 // pred_fallthru
        _
      %p175 = scmp.lt.s32.totalorder %s16, 2
      // Predicated region
      $region21: #{spacial_constancy_loss.2} parent=5 // pred_check
        %p176 = pneg %p175
      $region22: #{spacial_constancy_loss.2} parent=5 // pred_check_branch
        %178 = sbr.rel (%p176) target = $region24
      $region23: #{spacial_constancy_loss.2} parent=5 // pred_region
        // Predicated region
        $region25: #{spacial_constancy_loss.2} parent=23 // pred_check
          %p179 = pneg %p50
        $region26: #{spacial_constancy_loss.2} parent=23 // pred_check_branch
          %181 = sbr.rel (%p179) target = $region28
        $region27: #{spacial_constancy_loss.2} parent=23 // pred_region
          %s182 = sand.u32 %s40, 1
          %s183 = scalar_lea.sflag [#allocation3], %s182
          %s184 = sand.u32 %s40, 1
          %s185 = smul.addr %s184, 64
          %s186 = scalar_lea.vmem [#allocation2], %s185
          %s187 = smul.u32 2, %s24
          %189 = vsyncadd %s183, 0
          %s190 = smul.addr %s23, 8
          %s191 = sadd.s32 %s187, %s190
          %s192 = smul.addr %s191, 8
          %s193 = scalar_lea.hbm %s0, %s192
          %s194 = sshll.u32 %s193, 4
          %s195 = int_to_ptr.hbm [resolvable:$true] %s194
          %s196 = sshll.u32 %s186, 4
          %s197 = int_to_ptr.vmem [resolvable:$true] %s196
          %202 = dma.hbm_to_vmem [thread:$0]  %s195, 1024, %s197, %s183, 128, 128, 8
        $region28: #{spacial_constancy_loss.2} parent=23 // pred_fallthru
          _
        // Predicated region
        $region29: #{spacial_constancy_loss.2} parent=23 // pred_check
          %p203 = pneg %p78
        $region30: #{spacial_constancy_loss.2} parent=23 // pred_check_branch
          %205 = sbr.rel (%p203) target = $region32
        $region31: #{spacial_constancy_loss.2} parent=23 // pred_region
          %s206 = sand.u32 %s68, 1
          %s207 = scalar_lea.sflag [#allocation5], %s206
          %s208 = sand.u32 %s68, 1
          %s209 = smul.addr %s208, 64
          %s210 = scalar_lea.vmem [#allocation4], %s209
          %s211 = smul.u32 2, %s24
          %213 = vsyncadd %s207, 0
          %s214 = smul.addr %s23, 8
          %s215 = sadd.s32 %s211, %s214
          %s216 = smul.addr %s215, 8
          %s217 = scalar_lea.hbm %s1, %s216
          %s218 = sshll.u32 %s217, 4
          %s219 = int_to_ptr.hbm [resolvable:$true] %s218
          %s220 = sshll.u32 %s210, 4
          %s221 = int_to_ptr.vmem [resolvable:$true] %s220
          %226 = dma.hbm_to_vmem [thread:$0]  %s219, 1024, %s221, %s207, 128, 128, 8
        $region32: #{spacial_constancy_loss.2} parent=23 // pred_fallthru
          _
      $region24: #{spacial_constancy_loss.2} parent=5 // pred_fallthru
        _
      %p227 = scmp.le.s32.totalorder 1, %s16
      %p228 = scmp.lt.s32.totalorder %s16, 3
      %p229 = pnand %p227, %p228
      %p230 = pneg %p229
      // Predicated region
      $region33: #{spacial_constancy_loss.2} parent=5 // pred_check
        _
      $region34: #{spacial_constancy_loss.2} parent=5 // pred_check_branch
        %232 = sbr.rel (%p229) target = $region36
      $region35: #{spacial_constancy_loss.2} parent=5 // pred_region
        %s233 = ssub.s32 %s16, 1
        %s234 = sand.u32 %s43, 1
        %s235 = scalar_lea.sflag [#allocation3], %s234
        %s236 = sand.u32 %s43, 1
        %s237 = smul.addr %s236, 64
        %s238 = scalar_lea.vmem [#allocation2], %s237
        // Predicated region
        $region37: #{spacial_constancy_loss.2} parent=35 // pred_check
          %p239 = pneg %p56
        $region38: #{spacial_constancy_loss.2} parent=35 // pred_check_branch
          %241 = sbr.rel (%p239) target = $region40
        $region39: #{spacial_constancy_loss.2} parent=35 // pred_region
          %243 = dma.done %s235, 1024
        $region40: #{spacial_constancy_loss.2} parent=35 // pred_fallthru
          _
        %s244 = sand.u32 %s71, 1
        %s245 = scalar_lea.sflag [#allocation5], %s244
        %s246 = sand.u32 %s71, 1
        %s247 = smul.addr %s246, 64
        %s248 = scalar_lea.vmem [#allocation4], %s247
        // Predicated region
        $region41: #{spacial_constancy_loss.2} parent=35 // pred_check
          %p249 = pneg %p84
        $region42: #{spacial_constancy_loss.2} parent=35 // pred_check_branch
          %251 = sbr.rel (%p249) target = $region44
        $region43: #{spacial_constancy_loss.2} parent=35 // pred_region
          %253 = dma.done %s245, 1024
        $region44: #{spacial_constancy_loss.2} parent=35 // pred_fallthru
          _
        %s254 = sand.u32 %s43, 1
        %s255 = scalar_lea.sflag [#allocation3], %s254
        %s256 = sand.u32 %s43, 1
        %s257 = smul.addr %s256, 64
        %s258 = scalar_lea.vmem [#allocation2], %s257
        %p259 = pneg %p56
        %p260 = pneg %p53
        %s261 = sand.u32 %s71, 1
        %s262 = scalar_lea.sflag [#allocation5], %s261
        %s263 = sand.u32 %s71, 1
        %s264 = smul.addr %s263, 64
        %s265 = scalar_lea.vmem [#allocation4], %s264
        %p266 = pneg %p84
        %p267 = pneg %p81
        %p268 = pneg %p105
        %p269 = pneg %p102
        %p270 = pneg %p126
        %p271 = pneg %p123
        %p272 = pneg %p154
        %p273 = pneg %p151
        %p274 = scmp.lt.s32.totalorder %s25, 1
        %s275 = scalar_select %p274, %s25, 1
        %p276 = scmp.lt.s32.totalorder %s26, 0
        %s277 = scalar_select %p276, %s26, 0
        %s278 = sadd.s32 %s277, %s275
        %s279 = smul.addr %s278, 4
        %s280 = scalar_lea.vmem %s4, %s279
        %s281 = smul.u32 2, %s26
        %s282 = smul.u32 2, %s26
        %p283 = scmp.lt.s32.totalorder %s25, 1
        %s284 = scalar_select %p283, %s25, 1
        %p285 = scmp.lt.s32.totalorder %s26, 0
        %s286 = scalar_select %p285, %s26, 0
        %s287 = sadd.s32 %s286, %s284
        %s288 = smul.addr %s287, 4
        %s289 = scalar_lea.vmem %s4, %s288
        %v290 = vld [vmem:[%s238] sm:$0xff]
        %v291 = vld [vmem:[%s238 + $0x8] sm:$0xff]
        %v292 = vld [vmem:[%s248] sm:$0xff]
        %v293 = vld [vmem:[%s248 + $0x8] sm:$0xff]
        %v294 = vsub.f32 %v290, %v292
        %v295 = vsub.f32 %v291, %v293
        %s296 = scalar_lea.vmem %s238, 16 [#allocation2]
        %v297 = vld [vmem:[%s296] sm:$0xff]
        %v298 = vld [vmem:[%s296 + $0x8] sm:$0xff]
        %s299 = scalar_lea.vmem %s248, 16 [#allocation4]
        %v300 = vld [vmem:[%s299] sm:$0xff]
        %v301 = vld [vmem:[%s299 + $0x8] sm:$0xff]
        %v302 = vsub.f32 %v297, %v300
        %v303 = vsub.f32 %v298, %v301
        %v304 = vadd.f32 %v294, %v302
        %v305 = vadd.f32 %v295, %v303
        %s306 = scalar_lea.vmem %s238, 32 [#allocation2]
        %v307 = vld [vmem:[%s306] sm:$0xff]
        %v308 = vld [vmem:[%s306 + $0x8] sm:$0xff]
        %s309 = scalar_lea.vmem %s248, 32 [#allocation4]
        %v310 = vld [vmem:[%s309] sm:$0xff]
        %v311 = vld [vmem:[%s309 + $0x8] sm:$0xff]
        %v312 = vsub.f32 %v307, %v310
        %v313 = vsub.f32 %v308, %v311
        %v314 = vadd.f32 %v304, %v312
        %v315 = vadd.f32 %v305, %v313
        %s316 = scalar_lea.vmem %s238, 48 [#allocation2]
        %v317 = vld [vmem:[%s316] sm:$0xff]
        %v318 = vld [vmem:[%s316 + $0x8] sm:$0xff]
        %s319 = scalar_lea.vmem %s248, 48 [#allocation4]
        %v320 = vld [vmem:[%s319] sm:$0xff]
        %v321 = vld [vmem:[%s319 + $0x8] sm:$0xff]
        %v322 = vsub.f32 %v317, %v320
        %v323 = vsub.f32 %v318, %v321
        %v324 = vadd.f32 %v314, %v322
        %v325 = vadd.f32 %v315, %v323
        %v326 = vld [vmem:[%s3] sm:$0xff]
        %v327 = vld [vmem:[%s3 + $0x8] sm:$0xff]
        %vm328 = vcmask 130048
        %v330 = vsel %vm328, %v324, 0
        %v333 = vsel %vm328, %v325, 0
        %335 = vmatpush.msra.mxu0 0.0
        %336 = vmatpush.msra.mxu0 0.0
        %337 = vmatpush.msra.mxu0 0.0
        %338 = vmatpush.msra.mxu0 0.0
        %339 = vmatpush.msra.mxu0 0.0
        %340 = vmatpush.msra.mxu0 0.0
        %341 = vmatpush.msra.mxu0 0.0
        %342 = vmatpush.msra.mxu0 0.0
        %343 = vmatpush.msra.mxu0 0.0
        %344 = vmatpush.msra.mxu0 0.0
        %345 = vmatpush.msra.mxu0 0.0
        %346 = vmatpush.msra.mxu0 0.0
        %347 = vmatpush.msra.mxu0 0.0
        %348 = vmatpush.msra.mxu0 0.0
        %349 = vmatpush.msra.mxu0 %v327
        %350 = vmatpush.msra.mxu0 %v326
        %351 = vmatmul.f32.gmra.mxu0 %v330
        %v352 = vpop.f32.mrf.mxu0
        %v353 = vadd.f32 0.0, %v352
        %354 = vmatmul.f32.gmra.mxu0 %v333
        %v355 = vpop.f32.mrf.mxu0
        %v356 = vadd.f32 0.0, %v355
        %357 = vdwg.mxu0
        %v358 = vld [vmem:[%s2] sm:$0xf]
        %v360 = vsel %vm328, %v358, 0
        %362 = vmatpush.msra.mxu0 0.0
        %363 = vmatpush.msra.mxu0 0.0
        %364 = vmatpush.msra.mxu0 0.0
        %365 = vmatpush.msra.mxu0 0.0
        %366 = vmatpush.msra.mxu0 0.0
        %367 = vmatpush.msra.mxu0 0.0
        %368 = vmatpush.msra.mxu0 0.0
        %369 = vmatpush.msra.mxu0 0.0
        %370 = vmatpush.msra.mxu0 0.0
        %371 = vmatpush.msra.mxu0 0.0
        %372 = vmatpush.msra.mxu0 0.0
        %373 = vmatpush.msra.mxu0 0.0
        %374 = vmatpush.msra.mxu0 0.0
        %375 = vmatpush.msra.mxu0 0.0
        %376 = vmatpush.msra.mxu0 %v356
        %377 = vmatpush.msra.mxu0 %v353
        %378 = vmatmul.f32.gmra.mxu0 %v360
        %v379 = vpop.f32.mrf.mxu0
        %v380 = vadd.f32 0.0, %v379
        %381 = vdwg.mxu0
        %vm382 = vcmask 27648
        %383 = vst.msk [vmem:[%s289] sm:$0xf] %vm382, %v380
        %p384 = scmp.lt.s32.totalorder %s25, 1
        %s385 = scalar_select %p384, %s25, 1
        %p386 = scmp.lt.s32.totalorder %s26, 0
        %s387 = scalar_select %p386, %s26, 0
        %s388 = sadd.s32 %s387, %s385
        %s389 = smul.addr %s388, 4
        %s390 = scalar_lea.vmem %s4, %s389
        // Predicated region
        $region45: #{spacial_constancy_loss.2} parent=35 // pred_check
          %p391 = pneg %p151
        $region46: #{spacial_constancy_loss.2} parent=35 // pred_check_branch
          %393 = sbr.rel (%p391) target = $region48
        $region47: #{spacial_constancy_loss.2} parent=35 // pred_region
          _
        $region48: #{spacial_constancy_loss.2} parent=35 // pred_fallthru
          _
      $region36: #{spacial_constancy_loss.2} parent=5 // pred_fallthru
        _
      %p394 = scmp.le.s32.totalorder 2, %s16
      // Predicated region
      $region49: #{spacial_constancy_loss.2} parent=5 // pred_check
        %p395 = pneg %p394
      $region50: #{spacial_constancy_loss.2} parent=5 // pred_check_branch
        %397 = sbr.rel (%p395) target = $region52
      $region51: #{spacial_constancy_loss.2} parent=5 // pred_region
        %s398 = ssub.s32 %s16, 2
        // Predicated region
        $region53: #{spacial_constancy_loss.2} parent=51 // pred_check
          %p399 = pneg %p157
        $region54: #{spacial_constancy_loss.2} parent=51 // pred_check_branch
          %401 = sbr.rel (%p399) target = $region56
        $region55: #{spacial_constancy_loss.2} parent=51 // pred_region
          %p402 = scmp.lt.s32.totalorder %s27, 1
          %s403 = scalar_select %p402, %s27, 1
          %p404 = scmp.lt.s32.totalorder %s28, 0
          %s405 = scalar_select %p404, %s28, 0
          %s406 = sadd.s32 %s405, %s403
          %s407 = smul.addr %s406, 4
          %s408 = scalar_lea.vmem %s4, %s407
        $region56: #{spacial_constancy_loss.2} parent=51 // pred_fallthru
          _
      $region52: #{spacial_constancy_loss.2} parent=5 // pred_fallthru
        _
    $region6: #{spacial_constancy_loss.2} parent=1 // loop_footer
      %s20 = sadd.s32 1, %s16
    $region7: #{spacial_constancy_loss.2} parent=1 // loop_footer_branch
      %15 = sbr.rel target = $region3
    $region8: #{spacial_constancy_loss.2} parent=1 // loop_exit
      _
    %409 = vsyncpa [#allocation3], 1
    %s410 = scalar_lea.sflag [#allocation3], 1
    %411 = vsyncpa %s410, 1
    %412 = vsyncpa [#allocation5], 1
    %s413 = scalar_lea.sflag [#allocation5], 1
    %414 = vsyncpa %s413, 1

</llo_original>
